<compile_context>
chip_gen: v5e
topology: v5e:2x2
jax: 0.10.0
libtpu: 0.0.40
codegen_flags: <defaults>
</compile_context>

<pallas_src>
import functools

import jax
import jax.numpy as jnp
from jax.experimental import pallas as pl
from jax.experimental.pallas import tpu as pltpu

N_CLASSES = 15
GAMMA = 2.0          # implemented as pt*pt
ALPHA = 0.25
ANCHOR_WEIGHT = 0.1
LOSS_WEIGHT = 1.0


def _round_up(x, m):
    return (x + m - 1) // m * m


def _cdiv(a, b):
    return -(-a // b)


def _anchor_focal_partials_kernel(pred_ref, targ_ref, out_ref, *,
                                  n_real, tile_n, n_classes):
    """One grid step == one tile of `tile_n` samples.

    pred_ref: (tile_n, C) logits in their native (N, C) layout
    targ_ref: (1, tile_n) int32 labels (value C == background)
    out_ref : (1, 8, 128) f32 partial slab; lanes 0/1/2 hold
              [focal_sum, anchor_dist_sum, fg_count] for this tile.
    """
    x_nc = pred_ref[...]
    targ = targ_ref[...]

    # ---- lane-dense relayout (classes -> sublanes, samples -> lanes), in-kernel on
    #      the otherwise-idle MXU.  eye is exact 0/1, HIGHEST keeps full f32 mantissa,
    #      so this is an (essentially exact) transpose with no extra HBM pass.
    rr = jax.lax.broadcasted_iota(jnp.int32, (n_classes, n_classes), 0)
    cc = jax.lax.broadcasted_iota(jnp.int32, (n_classes, n_classes), 1)
    eye = jnp.where(rr == cc, 1.0, 0.0).astype(x_nc.dtype)
    x = jax.lax.dot_general(
        eye, x_nc,
        dimension_numbers=(((1,), (1,)), ((), ())),        # eye @ x_nc^T
        preferred_element_type=jnp.float32,
        precision=jax.lax.Precision.HIGHEST)               # (C, tile_n) f32

    # ---- ragged tail: traced only when N % tile_n != 0.  Out-of-range lanes get
    #      x = -100 (focal & anchor contributions vanish) and a background label
    #      (no spurious foreground), so garbage DMA padding can never leak in.
    if n_real % tile_n != 0:
        rem = n_real - pl.program_id(0) * tile_n
        lane_x = jax.lax.broadcasted_iota(jnp.int32, x.shape, 1)
        x = jnp.where(lane_x < rem, x, -100.0)
        lane_t = jax.lax.broadcasted_iota(jnp.int32, targ.shape, 1)
        targ = jnp.where(lane_t < rem, targ, n_classes)

    # ---- one-hot as a boolean mask.  Row iota only spans the C real classes, so the
    #      background label (== C) and sanitized labels never match: no pad-class guard.
    cls = jax.lax.broadcasted_iota(jnp.int32, x.shape, 0)
    tb = cls == targ                                        # (C, tile_n) bool

    # ---- sigmoid focal loss: one shared exp(-|x|), gamma==2 as pt*pt, constants folded,
    #      selects on the bool mask instead of f32 one-hot multiplies.
    nx = -x
    e = jnp.exp(jnp.minimum(x, nx))                         # exp(-|x|)
    ope = 1.0 + e
    log_term = jnp.log(ope)                                 # log(1 + exp(-|x|))
    inv = pl.reciprocal(ope, approx=True)                   # EUP slot, off the VALU
    # pt = (1-p)*t + p*(1-t) collapses to a single select on (t == (x>=0)).
    pt = jnp.where(tb == (x >= 0.0), 1.0 - inv, inv)
    focal_w = jnp.where(tb, ALPHA, 1.0 - ALPHA) * (pt * pt)
    bce = jnp.maximum(jnp.where(tb, nx, x), 0.0) + log_term  # BCE-with-logits, stable
    focal_sum = jnp.sum(bce * focal_w)

    # ---- anchor distance, closed form (anchors = 10*I - 5):
    #      dist_n^2 = sum_c (x[c,n] + 5)^2 - 20 * x[target_n, n]
    xp5 = x + 5.0
    sq_sum = jnp.sum(xp5 * xp5, axis=0, keepdims=True)       # (1, tile_n)
    xt_sum = jnp.sum(jnp.where(tb, x, 0.0), axis=0, keepdims=True)
    dist = jnp.sqrt(jnp.maximum(sq_sum - 20.0 * xt_sum, 0.0))
    fg = targ < n_classes                                     # (1, tile_n) bool
    anchor_sum = jnp.sum(jnp.where(fg, dist, 0.0))
    fg_count = jnp.sum(jnp.where(fg, 1.0, 0.0))

    # ---- per-tile partials to this tile's own output slab (race-free under a fully
    #      "parallel" grid; the wrapper does the tiny final combine).
    lane = jax.lax.broadcasted_iota(jnp.int32, (1, 8, 128), 2)
    out_ref[...] = (jnp.where(lane == 0, focal_sum, 0.0)
                    + jnp.where(lane == 1, anchor_sum, 0.0)
                    + jnp.where(lane == 2, fg_count, 0.0))


def _choose_tile(n, max_tile):
    if n <= max_tile:
        return n                    # single tile, block == full array dims (always legal)
    k = _cdiv(n, max_tile)          # number of tiles that minimizes padding waste
    return _round_up(_cdiv(n, k), 128)


def anchor_focal_loss(pred, target, *, tile_n=None, max_tile=16384):
    """pred: (N, 15) logits (f32 or bf16); target: (N,) int labels in [0, 15],
    15 == background.  Returns the scalar loss (reduction='mean', weight=None)."""
    n, c = pred.shape
    assert c == N_CLASSES
    if pred.dtype not in (jnp.float32, jnp.bfloat16):
        pred = pred.astype(jnp.float32)
    targ2d = target.astype(jnp.int32).reshape(1, n)          # metadata-only reshape

    if tile_n is None:
        tile_n = _choose_tile(n, max_tile)
    if tile_n >= n:
        tile_n = n
    elif tile_n % 128 != 0:
        tile_n = _round_up(tile_n, 128)
    num_tiles = _cdiv(n, tile_n)

    kernel = functools.partial(
        _anchor_focal_partials_kernel,
        n_real=n, tile_n=tile_n, n_classes=c)

    partials = pl.pallas_call(
        kernel,
        out_shape=jax.ShapeDtypeStruct((num_tiles, 8, 128), jnp.float32),
        grid_spec=pltpu.PrefetchScalarGridSpec(
            num_scalar_prefetch=0,
            grid=(num_tiles,),
            in_specs=[
                # pred in its NATIVE layout: last dim 15 == full dim -> legal block.
                pl.BlockSpec((tile_n, c), lambda i: (i, 0)),
                pl.BlockSpec((1, tile_n), lambda i: (0, i)),
            ],
            out_specs=pl.BlockSpec((1, 8, 128), lambda i: (i, 0, 0)),
        ),
        compiler_params=pltpu.CompilerParams(
            dimension_semantics=("parallel",),          # both v7x TensorCores used
            vmem_limit_bytes=40 * 1024 * 1024),
    )(pred, targ2d)

    focal_sum = jnp.sum(partials[:, 0, 0])
    anchor_sum = jnp.sum(partials[:, 0, 1])
    fg_count = jnp.sum(partials[:, 0, 2])
    loss_focal = focal_sum / float(n * c)
    loss_anchor = anchor_sum / jnp.maximum(fg_count, 1.0)    # exactly 0 when no fg
    return LOSS_WEIGHT * (loss_focal + ANCHOR_WEIGHT * loss_anchor)


def _reference(pred, target):
    """Pure-JAX reference of the same semantics, for validation."""
    n, c = pred.shape
    x = pred.astype(jnp.float32)
    anchors = jnp.where(jnp.eye(c, dtype=jnp.float32) > 0, 5.0, -5.0)
    t = jax.nn.one_hot(target, c + 1, dtype=jnp.float32)[:, :c]
    p = jax.nn.sigmoid(x)
    pt = (1 - p) * t + p * (1 - t)
    focal_w = (ALPHA * t + (1 - ALPHA) * (1 - t)) * pt ** GAMMA
    bce = jnp.maximum(x, 0) - x * t + jnp.log1p(jnp.exp(-jnp.abs(x)))
    loss_focal = jnp.mean(bce * focal_w)
    dist = jnp.linalg.norm(x[:, None, :] - anchors[None, :, :], axis=-1)
    fg = target != c
    gathered = jnp.take_along_axis(dist, jnp.clip(target, 0, c - 1)[:, None], axis=1)[:, 0]
    num_fg = jnp.sum(fg)
    loss_anchor = jnp.where(
        num_fg > 0,
        jnp.sum(jnp.where(fg, gathered, 0.0)) / jnp.maximum(num_fg, 1),
        0.0)
    return LOSS_WEIGHT * (loss_focal + ANCHOR_WEIGHT * loss_anchor)


if __name__ == "__main__":
    key = jax.random.PRNGKey(0)
    ks = jax.random.split(key, 6)

    # small demo shape: (N, C) = (64, 15); labels in [0, 15], 15 == background
    n1 = 64
    pred1 = jax.random.normal(ks[0], (n1, N_CLASSES), dtype=jnp.float32)
    targ1 = jax.random.randint(ks[1], (n1,), 0, N_CLASSES + 1, dtype=jnp.int32)
    loss1 = anchor_focal_loss(pred1, targ1)
    jax.block_until_ready(loss1)
    ref1 = _reference(pred1, targ1)
    assert jnp.allclose(loss1, ref1, rtol=2e-3, atol=1e-4), (float(loss1), float(ref1))

    # multi-tile, fully parallel grid, no ragged tail (384 = 3 * 128)
    n2 = 384
    pred2 = jax.random.normal(ks[2], (n2, N_CLASSES), dtype=jnp.float32)
    targ2 = jax.random.randint(ks[3], (n2,), 0, N_CLASSES + 1, dtype=jnp.int32)
    loss2 = anchor_focal_loss(pred2, targ2, tile_n=128)
    jax.block_until_ready(loss2)
    ref2 = _reference(pred2, targ2)
    assert jnp.allclose(loss2, ref2, rtol=2e-3, atol=1e-4), (float(loss2), float(ref2))

    # multi-tile with a ragged last tile (300 = 2*128 + 44)
    n3 = 300
    pred3 = jax.random.normal(ks[4], (n3, N_CLASSES), dtype=jnp.float32)
    targ3 = jax.random.randint(ks[5], (n3,), 0, N_CLASSES + 1, dtype=jnp.int32)
    loss3 = anchor_focal_loss(pred3, targ3, tile_n=128)
    jax.block_until_ready(loss3)
    ref3 = _reference(pred3, targ3)
    assert jnp.allclose(loss3, ref3, rtol=2e-3, atol=1e-4), (float(loss3), float(ref3))

    print("KERNEL_OK")
</pallas_src>

<mosaic_0001>
module attributes {stable_mosaic.version = 11 : i64} {
  func.func @_anchor_focal_partials_kernel(%arg0: i32, %arg1: memref<64x15xf32, #tpu.memory_space<vmem>>, %arg2: memref<1x64xi32, #tpu.memory_space<vmem>>, %arg3: memref<1x8x128xf32, #tpu.memory_space<vmem>>) attributes {dimension_semantics = [#tpu.dimension_semantics<parallel>], iteration_bounds = array<i64: 1>, scalar_prefetch = 0 : i64, scratch_operands = 0 : i64, tpu.core_type = #tpu.core_type<tc>, window_params = [{transform_indices = @transform_0, window_bounds = array<i64: 64, 15>}, {transform_indices = @transform_1, window_bounds = array<i64: 1, 64>}, {transform_indices = @transform_2, window_bounds = array<i64: 1, 8, 128>}]} {
    %c0 = arith.constant 0 : index
    %c0_0 = arith.constant 0 : index
    %0 = vector.load %arg1[%c0, %c0_0] : memref<64x15xf32, #tpu.memory_space<vmem>>, vector<64x15xf32>
    %c0_1 = arith.constant 0 : index
    %c0_2 = arith.constant 0 : index
    %1 = vector.load %arg2[%c0_1, %c0_2] : memref<1x64xi32, #tpu.memory_space<vmem>>, vector<1x64xi32>
    %2 = tpu.iota {dimensions = array<i32: 0>} : vector<15x15xi32>
    %3 = tpu.iota {dimensions = array<i32: 1>} : vector<15x15xi32>
    %4 = arith.cmpi eq, %2, %3 : vector<15x15xi32>
    %cst = arith.constant 1.000000e+00 : f32
    %cst_3 = arith.constant 0.000000e+00 : f32
    %5 = vector.broadcast %cst : f32 to vector<15x15xf32>
    %6 = vector.broadcast %cst_3 : f32 to vector<15x15xf32>
    %7 = arith.select %4, %5, %6 : vector<15x15xi1>, vector<15x15xf32>
    %cst_4 = arith.constant dense<0.000000e+00> : vector<15x64xf32>
    %8 = tpu.matmul %7, %0, %cst_4 {dimension_numbers = #tpu.dot_dimension_numbers<[1], [1], [0], [0], [0, 0, 1, 0], [], []>, precision = #tpu.contract_precision<fp32>} : vector<15x15xf32>, vector<64x15xf32>, vector<15x64xf32> -> vector<15x64xf32>
    %9 = tpu.iota {dimensions = array<i32: 0>} : vector<15x64xi32>
    %10 = vector.broadcast %1 : vector<1x64xi32> to vector<15x64xi32>
    %11 = arith.cmpi eq, %9, %10 : vector<15x64xi32>
    %cst_5 = arith.constant 0.000000e+00 : f32
    %12 = vector.broadcast %cst_5 : f32 to vector<15x64xf32>
    %13 = arith.subf %12, %8 : vector<15x64xf32>
    %14 = arith.minimumf %8, %13 : vector<15x64xf32>
    %15 = math.exp %14 : vector<15x64xf32>
    %cst_6 = arith.constant 1.000000e+00 : f32
    %16 = vector.broadcast %cst_6 : f32 to vector<15x64xf32>
    %17 = arith.addf %16, %15 : vector<15x64xf32>
    %18 = math.log %17 : vector<15x64xf32>
    %19 = tpu.reciprocal %17 {approx = true} : vector<15x64xf32> -> vector<15x64xf32>
    %cst_7 = arith.constant 0.000000e+00 : f32
    %20 = vector.broadcast %cst_7 : f32 to vector<15x64xf32>
    %21 = arith.cmpf oge, %8, %20 : vector<15x64xf32>
    %22 = arith.xori %11, %21 : vector<15x64xi1>
    %cst_8 = arith.constant dense<true> : vector<15x64xi1>
    %23 = arith.xori %22, %cst_8 : vector<15x64xi1>
    %cst_9 = arith.constant 1.000000e+00 : f32
    %24 = vector.broadcast %cst_9 : f32 to vector<15x64xf32>
    %25 = arith.subf %24, %19 : vector<15x64xf32>
    %26 = arith.select %23, %25, %19 : vector<15x64xi1>, vector<15x64xf32>
    %cst_10 = arith.constant 2.500000e-01 : f32
    %cst_11 = arith.constant 7.500000e-01 : f32
    %27 = vector.broadcast %cst_10 : f32 to vector<15x64xf32>
    %28 = vector.broadcast %cst_11 : f32 to vector<15x64xf32>
    %29 = arith.select %11, %27, %28 : vector<15x64xi1>, vector<15x64xf32>
    %30 = arith.mulf %26, %26 : vector<15x64xf32>
    %31 = arith.mulf %29, %30 : vector<15x64xf32>
    %32 = arith.select %11, %13, %8 : vector<15x64xi1>, vector<15x64xf32>
    %cst_12 = arith.constant 0.000000e+00 : f32
    %33 = vector.broadcast %cst_12 : f32 to vector<15x64xf32>
    %34 = arith.maximumf %32, %33 : vector<15x64xf32>
    %35 = arith.addf %34, %18 : vector<15x64xf32>
    %36 = arith.mulf %35, %31 : vector<15x64xf32>
    %37 = vector.shape_cast %36 : vector<15x64xf32> to vector<1x15x64xf32>
    %cst_13 = arith.constant dense<0.000000e+00> : vector<1xf32>
    %38 = vector.multi_reduction <add>, %37, %cst_13 [1, 2] : vector<1x15x64xf32> to vector<1xf32>
    %39 = vector.shape_cast %38 : vector<1xf32> to vector<1x1x1xf32>
    %40 = vector.extract %39[0, 0, 0] : f32 from vector<1x1x1xf32>
    %cst_14 = arith.constant 5.000000e+00 : f32
    %41 = vector.broadcast %cst_14 : f32 to vector<15x64xf32>
    %42 = arith.addf %8, %41 : vector<15x64xf32>
    %43 = arith.mulf %42, %42 : vector<15x64xf32>
    %cst_15 = arith.constant dense<0.000000e+00> : vector<64xf32>
    %44 = vector.multi_reduction <add>, %43, %cst_15 [0] : vector<15x64xf32> to vector<64xf32>
    %45 = vector.shape_cast %44 : vector<64xf32> to vector<1x64xf32>
    %cst_16 = arith.constant 0.000000e+00 : f32
    %46 = vector.broadcast %cst_16 : f32 to vector<15x64xf32>
    %47 = arith.select %11, %8, %46 : vector<15x64xi1>, vector<15x64xf32>
    %cst_17 = arith.constant dense<0.000000e+00> : vector<64xf32>
    %48 = vector.multi_reduction <add>, %47, %cst_17 [0] : vector<15x64xf32> to vector<64xf32>
    %49 = vector.shape_cast %48 : vector<64xf32> to vector<1x64xf32>
    %cst_18 = arith.constant 2.000000e+01 : f32
    %50 = vector.broadcast %cst_18 : f32 to vector<1x64xf32>
    %51 = arith.mulf %50, %49 : vector<1x64xf32>
    %52 = arith.subf %45, %51 : vector<1x64xf32>
    %cst_19 = arith.constant 0.000000e+00 : f32
    %53 = vector.broadcast %cst_19 : f32 to vector<1x64xf32>
    %54 = arith.maximumf %52, %53 : vector<1x64xf32>
    %55 = math.sqrt %54 : vector<1x64xf32>
    %c15_i32 = arith.constant 15 : i32
    %56 = vector.broadcast %c15_i32 : i32 to vector<1x64xi32>
    %57 = arith.cmpi slt, %1, %56 : vector<1x64xi32>
    %cst_20 = arith.constant 0.000000e+00 : f32
    %58 = vector.broadcast %cst_20 : f32 to vector<1x64xf32>
    %59 = arith.select %57, %55, %58 : vector<1x64xi1>, vector<1x64xf32>
    %60 = vector.shape_cast %59 : vector<1x64xf32> to vector<1x1x64xf32>
    %cst_21 = arith.constant dense<0.000000e+00> : vector<1xf32>
    %61 = vector.multi_reduction <add>, %60, %cst_21 [1, 2] : vector<1x1x64xf32> to vector<1xf32>
    %62 = vector.shape_cast %61 : vector<1xf32> to vector<1x1x1xf32>
    %63 = vector.extract %62[0, 0, 0] : f32 from vector<1x1x1xf32>
    %cst_22 = arith.constant 1.000000e+00 : f32
    %cst_23 = arith.constant 0.000000e+00 : f32
    %64 = vector.broadcast %cst_22 : f32 to vector<1x64xf32>
    %65 = vector.broadcast %cst_23 : f32 to vector<1x64xf32>
    %66 = arith.select %57, %64, %65 : vector<1x64xi1>, vector<1x64xf32>
    %67 = vector.shape_cast %66 : vector<1x64xf32> to vector<1x1x64xf32>
    %cst_24 = arith.constant dense<0.000000e+00> : vector<1xf32>
    %68 = vector.multi_reduction <add>, %67, %cst_24 [1, 2] : vector<1x1x64xf32> to vector<1xf32>
    %69 = vector.shape_cast %68 : vector<1xf32> to vector<1x1x1xf32>
    %70 = vector.extract %69[0, 0, 0] : f32 from vector<1x1x1xf32>
    %71 = tpu.iota {dimensions = array<i32: 2>} : vector<1x8x128xi32>
    %c0_i32 = arith.constant 0 : i32
    %72 = vector.broadcast %c0_i32 : i32 to vector<1x8x128xi32>
    %73 = arith.cmpi eq, %71, %72 : vector<1x8x128xi32>
    %cst_25 = arith.constant 0.000000e+00 : f32
    %74 = vector.broadcast %40 : f32 to vector<1x8x128xf32>
    %75 = vector.broadcast %cst_25 : f32 to vector<1x8x128xf32>
    %76 = arith.select %73, %74, %75 : vector<1x8x128xi1>, vector<1x8x128xf32>
    %c1_i32 = arith.constant 1 : i32
    %77 = vector.broadcast %c1_i32 : i32 to vector<1x8x128xi32>
    %78 = arith.cmpi eq, %71, %77 : vector<1x8x128xi32>
    %cst_26 = arith.constant 0.000000e+00 : f32
    %79 = vector.broadcast %63 : f32 to vector<1x8x128xf32>
    %80 = vector.broadcast %cst_26 : f32 to vector<1x8x128xf32>
    %81 = arith.select %78, %79, %80 : vector<1x8x128xi1>, vector<1x8x128xf32>
    %82 = arith.addf %76, %81 : vector<1x8x128xf32>
    %c2_i32 = arith.constant 2 : i32
    %83 = vector.broadcast %c2_i32 : i32 to vector<1x8x128xi32>
    %84 = arith.cmpi eq, %71, %83 : vector<1x8x128xi32>
    %cst_27 = arith.constant 0.000000e+00 : f32
    %85 = vector.broadcast %70 : f32 to vector<1x8x128xf32>
    %86 = vector.broadcast %cst_27 : f32 to vector<1x8x128xf32>
    %87 = arith.select %84, %85, %86 : vector<1x8x128xi1>, vector<1x8x128xf32>
    %88 = arith.addf %82, %87 : vector<1x8x128xf32>
    %c0_28 = arith.constant 0 : index
    %c0_29 = arith.constant 0 : index
    %c0_30 = arith.constant 0 : index
    %89 = vector.load %arg3[%c0_28, %c0_29, %c0_30] : memref<1x8x128xf32, #tpu.memory_space<vmem>>, vector<1x8x128xf32>
    tpu.vector_store %arg3[%c0_28, %c0_29, %c0_30], %88 {strides = array<i32>} : memref<1x8x128xf32, #tpu.memory_space<vmem>>, vector<1x8x128xf32>,
    return
  }
  func.func @transform_0(%arg0: i32) -> (i32, i32) {
    %c0_i32 = arith.constant 0 : i32
    %c0_i32_0 = arith.constant 0 : i32
    return %arg0, %c0_i32 : i32, i32
  }
  func.func @transform_1(%arg0: i32) -> (i32, i32) {
    %c0_i32 = arith.constant 0 : i32
    %c0_i32_0 = arith.constant 0 : i32
    return %c0_i32, %arg0 : i32, i32
  }
  func.func @transform_2(%arg0: i32) -> (i32, i32, i32) {
    %c0_i32 = arith.constant 0 : i32
    %c0_i32_0 = arith.constant 0 : i32
    %c0_i32_1 = arith.constant 0 : i32
    return %arg0, %c0_i32, %c0_i32_0 : i32, i32, i32
  }
}

</mosaic_0001>

<llo_original>
// kernel: tpu_custom_call.1
$region0: #{tpu_custom_call.1}
  #allocation0 [shape = 'u32[]', space=smem, size = 0x4, offset = 0x4, fixed_abs, tag = 'smem constant byte address 0x4 - core index']
  #allocation1 [shape = 'u32[72,128]{1,0:T(1,128)}', space=vmem, size = 0x9000, scoped, tag = 'internal scratch']
  %s0 = inlined_call_operand.vmem [shape: f32[64,15], index: 0, kind: input, shape index: {}]
  %s1 = inlined_call_operand.vmem [shape: s32[1,64], index: 1, kind: input, shape index: {}]
  %s2 = inlined_call_operand.hbm [shape: f32[1,8,128], index: 2, kind: output, shape index: {}]
  %s3 = sld [smem:[#allocation0]]
  $region18: #{tpu_custom_call.1} parent=0
    _
  %s5 = ssub.s32 1, %s3
  %s6 = scalar_select 0, %s5, %s3
  $region1: #{tpu_custom_call.1} parent=0
    #allocation2 [shape = 'u8[4096]{0}', space=vmem, size = 0x1000, scoped, tag = 'output window, operand 0, single buffered']
    #allocation3 [shape = 's32[1]{0}', space=sflag, size = 0x4, scoped, tag = 'scoped memory for tpu_custom_call.1']
    %7 = vsyncpa [#allocation3], 0
    // Predicated region
    $region2: #{tpu_custom_call.1} parent=1 // pred_check
      _
    $region3: #{tpu_custom_call.1} parent=1 // pred_check_branch
      %9 = sbr.rel (0) target = $region5
    $region4: #{tpu_custom_call.1} parent=1 // pred_region
      _
    $region5: #{tpu_custom_call.1} parent=1 // pred_fallthru
      _
    // Predicated region
    $region6: #{tpu_custom_call.1} parent=1 // pred_check
      _
    $region7: #{tpu_custom_call.1} parent=1 // pred_check_branch
      %11 = sbr.rel (0) target = $region9
    $region8: #{tpu_custom_call.1} parent=1 // pred_region
      _
    $region9: #{tpu_custom_call.1} parent=1 // pred_fallthru
      _
    %v12 = vld [vmem:[%s0] sm:$0xff]
    %v13 = vld [vmem:[%s0 + $0x8] sm:$0xff]
    %v14 = vld [vmem:[%s0 + $0x10] sm:$0xff]
    %v15 = vld [vmem:[%s0 + $0x18] sm:$0xff]
    %v16 = vld [vmem:[%s0 + $0x20] sm:$0xff]
    %v17 = vld [vmem:[%s0 + $0x28] sm:$0xff]
    %v18 = vld [vmem:[%s0 + $0x30] sm:$0xff]
    %v19 = vld [vmem:[%s0 + $0x38] sm:$0xff]
    %v20 = vld [vmem:[%s1] sm:$0x1]
    %v21 = vlaneseq
    %v22 = vshrl.u32 %v21, 7
    %v23 = vadd.s32 %v22, 8
    %v24 = vlaneseq
    %v25 = vand.u32 %v24, 127
    %vm26 = vcmp.eq.s32.totalorder %v22, %v25
    %vm27 = vcmp.eq.s32.totalorder %v23, %v25
    %v28 = vsel %vm26, 1.0, 0.0
    %v29 = vsel %vm27, 1.0, 0.0
    %vm30 = vcmask 121856
    %v32 = vsel %vm30, %v28, 0
    %v35 = vsel %vm30, %v29, 0
    %v38 = vsel %vm30, %v12, 0
    %v41 = vsel %vm30, %v13, 0
    %v44 = vsel %vm30, %v14, 0
    %v47 = vsel %vm30, %v15, 0
    %v50 = vsel %vm30, %v16, 0
    %v53 = vsel %vm30, %v17, 0
    %v56 = vsel %vm30, %v18, 0
    %v59 = vsel %vm30, %v19, 0
    %61 = vmatpush.xpose.msra.mxu0 0.0
    %62 = vmatpush.xpose.msra.mxu0 0.0
    %63 = vmatpush.xpose.msra.mxu0 0.0
    %64 = vmatpush.xpose.msra.mxu0 0.0
    %65 = vmatpush.xpose.msra.mxu0 0.0
    %66 = vmatpush.xpose.msra.mxu0 0.0
    %67 = vmatpush.xpose.msra.mxu0 0.0
    %68 = vmatpush.xpose.msra.mxu0 0.0
    %v69 = vand.u32 %v59, 4294901760
    %70 = vmatpush.xpose.msra.mxu0 %v69
    %v71 = vand.u32 %v56, 4294901760
    %72 = vmatpush.xpose.msra.mxu0 %v71
    %v73 = vand.u32 %v53, 4294901760
    %74 = vmatpush.xpose.msra.mxu0 %v73
    %v75 = vand.u32 %v50, 4294901760
    %76 = vmatpush.xpose.msra.mxu0 %v75
    %v77 = vand.u32 %v47, 4294901760
    %78 = vmatpush.xpose.msra.mxu0 %v77
    %v79 = vand.u32 %v44, 4294901760
    %80 = vmatpush.xpose.msra.mxu0 %v79
    %v81 = vand.u32 %v41, 4294901760
    %82 = vmatpush.xpose.msra.mxu0 %v81
    %v83 = vand.u32 %v38, 4294901760
    %84 = vmatpush.xpose.msra.mxu0 %v83
    %v85 = vand.u32 %v32, 4294901760
    %v86 = vsub.f32 %v32, %v85
    %v87 = vand.u32 %v86, 4294901760
    %v88 = vsub.f32 %v86, %v87
    %v89 = vand.u32 %v88, 4294901760
    %90 = vmatmul.f32.gmra.mxu0 %v89
    %v91 = vpop.f32.mrf.mxu0
    %v92 = vadd.f32 0.0, %v91
    %v93 = vand.u32 %v35, 4294901760
    %v94 = vsub.f32 %v35, %v93
    %v95 = vand.u32 %v94, 4294901760
    %v96 = vsub.f32 %v94, %v95
    %v97 = vand.u32 %v96, 4294901760
    %98 = vmatmul.f32.gmra.mxu0 %v97
    %v99 = vpop.f32.mrf.mxu0
    %v100 = vadd.f32 0.0, %v99
    %101 = vdwg.mxu0
    %102 = vmatpush.xpose.msra.mxu0 0.0
    %103 = vmatpush.xpose.msra.mxu0 0.0
    %104 = vmatpush.xpose.msra.mxu0 0.0
    %105 = vmatpush.xpose.msra.mxu0 0.0
    %106 = vmatpush.xpose.msra.mxu0 0.0
    %107 = vmatpush.xpose.msra.mxu0 0.0
    %108 = vmatpush.xpose.msra.mxu0 0.0
    %109 = vmatpush.xpose.msra.mxu0 0.0
    %v110 = vand.u32 %v59, 4294901760
    %v111 = vsub.f32 %v59, %v110
    %v112 = vand.u32 %v111, 4294901760
    %v113 = vsub.f32 %v111, %v112
    %v114 = vand.u32 %v113, 4294901760
    %115 = vmatpush.xpose.msra.mxu0 %v114
    %v116 = vand.u32 %v56, 4294901760
    %v117 = vsub.f32 %v56, %v116
    %v118 = vand.u32 %v117, 4294901760
    %v119 = vsub.f32 %v117, %v118
    %v120 = vand.u32 %v119, 4294901760
    %121 = vmatpush.xpose.msra.mxu0 %v120
    %v122 = vand.u32 %v53, 4294901760
    %v123 = vsub.f32 %v53, %v122
    %v124 = vand.u32 %v123, 4294901760
    %v125 = vsub.f32 %v123, %v124
    %v126 = vand.u32 %v125, 4294901760
    %127 = vmatpush.xpose.msra.mxu0 %v126
    %v128 = vand.u32 %v50, 4294901760
    %v129 = vsub.f32 %v50, %v128
    %v130 = vand.u32 %v129, 4294901760
    %v131 = vsub.f32 %v129, %v130
    %v132 = vand.u32 %v131, 4294901760
    %133 = vmatpush.xpose.msra.mxu0 %v132
    %v134 = vand.u32 %v47, 4294901760
    %v135 = vsub.f32 %v47, %v134
    %v136 = vand.u32 %v135, 4294901760
    %v137 = vsub.f32 %v135, %v136
    %v138 = vand.u32 %v137, 4294901760
    %139 = vmatpush.xpose.msra.mxu0 %v138
    %v140 = vand.u32 %v44, 4294901760
    %v141 = vsub.f32 %v44, %v140
    %v142 = vand.u32 %v141, 4294901760
    %v143 = vsub.f32 %v141, %v142
    %v144 = vand.u32 %v143, 4294901760
    %145 = vmatpush.xpose.msra.mxu0 %v144
    %v146 = vand.u32 %v41, 4294901760
    %v147 = vsub.f32 %v41, %v146
    %v148 = vand.u32 %v147, 4294901760
    %v149 = vsub.f32 %v147, %v148
    %v150 = vand.u32 %v149, 4294901760
    %151 = vmatpush.xpose.msra.mxu0 %v150
    %v152 = vand.u32 %v38, 4294901760
    %v153 = vsub.f32 %v38, %v152
    %v154 = vand.u32 %v153, 4294901760
    %v155 = vsub.f32 %v153, %v154
    %v156 = vand.u32 %v155, 4294901760
    %157 = vmatpush.xpose.msra.mxu0 %v156
    %v158 = vand.u32 %v32, 4294901760
    %159 = vmatmul.f32.gmra.mxu0 %v158
    %v160 = vpop.f32.mrf.mxu0
    %v161 = vadd.f32 %v92, %v160
    %v162 = vand.u32 %v35, 4294901760
    %163 = vmatmul.f32.gmra.mxu0 %v162
    %v164 = vpop.f32.mrf.mxu0
    %v165 = vadd.f32 %v100, %v164
    %166 = vdwg.mxu0
    %167 = vmatpush.xpose.msra.mxu0 0.0
    %168 = vmatpush.xpose.msra.mxu0 0.0
    %169 = vmatpush.xpose.msra.mxu0 0.0
    %170 = vmatpush.xpose.msra.mxu0 0.0
    %171 = vmatpush.xpose.msra.mxu0 0.0
    %172 = vmatpush.xpose.msra.mxu0 0.0
    %173 = vmatpush.xpose.msra.mxu0 0.0
    %174 = vmatpush.xpose.msra.mxu0 0.0
    %v175 = vand.u32 %v59, 4294901760
    %v176 = vsub.f32 %v59, %v175
    %177 = vmatpush.xpose.msra.mxu0 %v176
    %v178 = vand.u32 %v56, 4294901760
    %v179 = vsub.f32 %v56, %v178
    %180 = vmatpush.xpose.msra.mxu0 %v179
    %v181 = vand.u32 %v53, 4294901760
    %v182 = vsub.f32 %v53, %v181
    %183 = vmatpush.xpose.msra.mxu0 %v182
    %v184 = vand.u32 %v50, 4294901760
    %v185 = vsub.f32 %v50, %v184
    %186 = vmatpush.xpose.msra.mxu0 %v185
    %v187 = vand.u32 %v47, 4294901760
    %v188 = vsub.f32 %v47, %v187
    %189 = vmatpush.xpose.msra.mxu0 %v188
    %v190 = vand.u32 %v44, 4294901760
    %v191 = vsub.f32 %v44, %v190
    %192 = vmatpush.xpose.msra.mxu0 %v191
    %v193 = vand.u32 %v41, 4294901760
    %v194 = vsub.f32 %v41, %v193
    %195 = vmatpush.xpose.msra.mxu0 %v194
    %v196 = vand.u32 %v38, 4294901760
    %v197 = vsub.f32 %v38, %v196
    %198 = vmatpush.xpose.msra.mxu0 %v197
    %v199 = vand.u32 %v32, 4294901760
    %v200 = vsub.f32 %v32, %v199
    %201 = vmatmul.f32.gmra.mxu0 %v200
    %v202 = vpop.f32.mrf.mxu0
    %v203 = vadd.f32 %v161, %v202
    %v204 = vand.u32 %v35, 4294901760
    %v205 = vsub.f32 %v35, %v204
    %206 = vmatmul.f32.gmra.mxu0 %v205
    %v207 = vpop.f32.mrf.mxu0
    %v208 = vadd.f32 %v165, %v207
    %209 = vdwg.mxu0
    %210 = vmatpush.xpose.msra.mxu0 0.0
    %211 = vmatpush.xpose.msra.mxu0 0.0
    %212 = vmatpush.xpose.msra.mxu0 0.0
    %213 = vmatpush.xpose.msra.mxu0 0.0
    %214 = vmatpush.xpose.msra.mxu0 0.0
    %215 = vmatpush.xpose.msra.mxu0 0.0
    %216 = vmatpush.xpose.msra.mxu0 0.0
    %217 = vmatpush.xpose.msra.mxu0 0.0
    %v218 = vand.u32 %v59, 4294901760
    %219 = vmatpush.xpose.msra.mxu0 %v218
    %v220 = vand.u32 %v56, 4294901760
    %221 = vmatpush.xpose.msra.mxu0 %v220
    %v222 = vand.u32 %v53, 4294901760
    %223 = vmatpush.xpose.msra.mxu0 %v222
    %v224 = vand.u32 %v50, 4294901760
    %225 = vmatpush.xpose.msra.mxu0 %v224
    %v226 = vand.u32 %v47, 4294901760
    %227 = vmatpush.xpose.msra.mxu0 %v226
    %v228 = vand.u32 %v44, 4294901760
    %229 = vmatpush.xpose.msra.mxu0 %v228
    %v230 = vand.u32 %v41, 4294901760
    %231 = vmatpush.xpose.msra.mxu0 %v230
    %v232 = vand.u32 %v38, 4294901760
    %233 = vmatpush.xpose.msra.mxu0 %v232
    %v234 = vand.u32 %v32, 4294901760
    %v235 = vsub.f32 %v32, %v234
    %v236 = vand.u32 %v235, 4294901760
    %237 = vmatmul.f32.gmra.mxu0 %v236
    %v238 = vpop.f32.mrf.mxu0
    %v239 = vadd.f32 %v203, %v238
    %v240 = vand.u32 %v35, 4294901760
    %v241 = vsub.f32 %v35, %v240
    %v242 = vand.u32 %v241, 4294901760
    %243 = vmatmul.f32.gmra.mxu0 %v242
    %v244 = vpop.f32.mrf.mxu0
    %v245 = vadd.f32 %v208, %v244
    %246 = vdwg.mxu0
    %247 = vmatpush.xpose.msra.mxu0 0.0
    %248 = vmatpush.xpose.msra.mxu0 0.0
    %249 = vmatpush.xpose.msra.mxu0 0.0
    %250 = vmatpush.xpose.msra.mxu0 0.0
    %251 = vmatpush.xpose.msra.mxu0 0.0
    %252 = vmatpush.xpose.msra.mxu0 0.0
    %253 = vmatpush.xpose.msra.mxu0 0.0
    %254 = vmatpush.xpose.msra.mxu0 0.0
    %v255 = vand.u32 %v59, 4294901760
    %v256 = vsub.f32 %v59, %v255
    %v257 = vand.u32 %v256, 4294901760
    %258 = vmatpush.xpose.msra.mxu0 %v257
    %v259 = vand.u32 %v56, 4294901760
    %v260 = vsub.f32 %v56, %v259
    %v261 = vand.u32 %v260, 4294901760
    %262 = vmatpush.xpose.msra.mxu0 %v261
    %v263 = vand.u32 %v53, 4294901760
    %v264 = vsub.f32 %v53, %v263
    %v265 = vand.u32 %v264, 4294901760
    %266 = vmatpush.xpose.msra.mxu0 %v265
    %v267 = vand.u32 %v50, 4294901760
    %v268 = vsub.f32 %v50, %v267
    %v269 = vand.u32 %v268, 4294901760
    %270 = vmatpush.xpose.msra.mxu0 %v269
    %v271 = vand.u32 %v47, 4294901760
    %v272 = vsub.f32 %v47, %v271
    %v273 = vand.u32 %v272, 4294901760
    %274 = vmatpush.xpose.msra.mxu0 %v273
    %v275 = vand.u32 %v44, 4294901760
    %v276 = vsub.f32 %v44, %v275
    %v277 = vand.u32 %v276, 4294901760
    %278 = vmatpush.xpose.msra.mxu0 %v277
    %v279 = vand.u32 %v41, 4294901760
    %v280 = vsub.f32 %v41, %v279
    %v281 = vand.u32 %v280, 4294901760
    %282 = vmatpush.xpose.msra.mxu0 %v281
    %v283 = vand.u32 %v38, 4294901760
    %v284 = vsub.f32 %v38, %v283
    %v285 = vand.u32 %v284, 4294901760
    %286 = vmatpush.xpose.msra.mxu0 %v285
    %v287 = vand.u32 %v32, 4294901760
    %288 = vmatmul.f32.gmra.mxu0 %v287
    %v289 = vpop.f32.mrf.mxu0
    %v290 = vadd.f32 %v239, %v289
    %v291 = vand.u32 %v35, 4294901760
    %292 = vmatmul.f32.gmra.mxu0 %v291
    %v293 = vpop.f32.mrf.mxu0
    %v294 = vadd.f32 %v245, %v293
    %295 = vdwg.mxu0
    %296 = vmatpush.xpose.msra.mxu0 0.0
    %297 = vmatpush.xpose.msra.mxu0 0.0
    %298 = vmatpush.xpose.msra.mxu0 0.0
    %299 = vmatpush.xpose.msra.mxu0 0.0
    %300 = vmatpush.xpose.msra.mxu0 0.0
    %301 = vmatpush.xpose.msra.mxu0 0.0
    %302 = vmatpush.xpose.msra.mxu0 0.0
    %303 = vmatpush.xpose.msra.mxu0 0.0
    %v304 = vand.u32 %v59, 4294901760
    %305 = vmatpush.xpose.msra.mxu0 %v304
    %v306 = vand.u32 %v56, 4294901760
    %307 = vmatpush.xpose.msra.mxu0 %v306
    %v308 = vand.u32 %v53, 4294901760
    %309 = vmatpush.xpose.msra.mxu0 %v308
    %v310 = vand.u32 %v50, 4294901760
    %311 = vmatpush.xpose.msra.mxu0 %v310
    %v312 = vand.u32 %v47, 4294901760
    %313 = vmatpush.xpose.msra.mxu0 %v312
    %v314 = vand.u32 %v44, 4294901760
    %315 = vmatpush.xpose.msra.mxu0 %v314
    %v316 = vand.u32 %v41, 4294901760
    %317 = vmatpush.xpose.msra.mxu0 %v316
    %v318 = vand.u32 %v38, 4294901760
    %319 = vmatpush.xpose.msra.mxu0 %v318
    %v320 = vand.u32 %v32, 4294901760
    %321 = vmatmul.f32.gmra.mxu0 %v320
    %v322 = vpop.f32.mrf.mxu0
    %v323 = vadd.f32 %v290, %v322
    %v324 = vand.u32 %v35, 4294901760
    %325 = vmatmul.f32.gmra.mxu0 %v324
    %v326 = vpop.f32.mrf.mxu0
    %v327 = vadd.f32 %v294, %v326
    %328 = vdwg.mxu0
    %v329 = vperm.slane %v20, 0
    %vm330 = vcmp.eq.s32.totalorder %v22, %v329
    %vm331 = vcmp.eq.s32.totalorder %v23, %v329
    %v332 = vsub.f32 0.0, %v323
    %v333 = vsub.f32 0.0, %v327
    %v334 = vmin.f32 %v323, %v332
    %v335 = vmin.f32 %v327, %v333
    %v336 = vmul.f32 %v334, 1.442695
    %v337 = vpow.pop %v336
    %v338 = vmul.f32 %v335, 1.442695
    %v339 = vpow.pop %v338
    %v340 = vadd.f32 %v337, 1.0
    %v341 = vadd.f32 %v339, 1.0
    %v342 = vlog2.pop %v340
    %v343 = vmul.f32 %v342, 0.6931472
    %v344 = vlog2.pop %v341
    %v345 = vmul.f32 %v344, 0.6931472
    %v346 = vrcp.pop %v340
    %v347 = vrcp.pop %v341
    %vm348 = vcmp.ge.f32.partialorder %v323, 0.0
    %vm349 = vcmp.ge.f32.partialorder %v327, 0.0
    %vm350 = vmxor %vm330, %vm348
    %vm351 = vmxor %vm331, %vm349
    %vm352 = vmxor %vm350, 1
    %vm353 = vmxor %vm351, 1
    %v354 = vsub.f32 1.0, %v346
    %v355 = vsub.f32 1.0, %v347
    %v356 = vsel %vm352, %v354, %v346
    %v357 = vsel %vm353, %v355, %v347
    %v358 = vsel %vm330, 0.25, 0.75
    %v359 = vsel %vm331, 0.25, 0.75
    %v360 = vmul.f32 %v356, %v356
    %v361 = vmul.f32 %v357, %v357
    %v362 = vmul.f32 %v358, %v360
    %v363 = vmul.f32 %v359, %v361
    %v364 = vsel %vm330, %v332, %v323
    %v365 = vsel %vm331, %v333, %v327
    %v366 = vmax.f32 %v364, 0.0
    %v367 = vmax.f32 %v365, 0.0
    %v368 = vadd.f32 %v366, %v343
    %v369 = vadd.f32 %v367, %v345
    %v370 = vmul.f32 %v368, %v362
    %v371 = vmul.f32 %v369, %v363
    %vm372 = vcmask 523264
    %v373 = vsel %vm372, %v370, 0.0
    %vm374 = vcmask 522240
    %v375 = vsel %vm374, %v371, 0.0
    %v376 = vadd.f32 %v373, %v375
    %377 = vadd.xlane.f32.xlu0 %v376
    %v378 = vpop.xlane.xlu0 %377
    %v379 = vrot.slane %v378, 4
    %v380 = vadd.f32 %v378, %v379
    %v381 = vrot.slane %v380, 2
    %v382 = vadd.f32 %v380, %v381
    %v383 = vrot.slane %v382, 1
    %v384 = vadd.f32 %v382, %v383
    %s385 = vtos %v384
    %v386 = vadd.f32 %v323, 5.0
    %v387 = vadd.f32 %v327, 5.0
    %v388 = vmul.f32 %v386, %v386
    %v389 = vmul.f32 %v387, %v387
    %v390 = vsel %vm372, %v388, 0.0
    %v391 = vsel %vm374, %v389, 0.0
    %v392 = vadd.f32 %v390, %v391
    %v393 = vrot.slane %v392, 4
    %v394 = vadd.f32 %v392, %v393
    %v395 = vrot.slane %v394, 2
    %v396 = vadd.f32 %v394, %v395
    %v397 = vrot.slane %v396, 1
    %v398 = vadd.f32 %v396, %v397
    %v399 = vsel %vm330, %v323, 0.0
    %v400 = vsel %vm331, %v327, 0.0
    %v401 = vsel %vm372, %v399, 0.0
    %v402 = vsel %vm374, %v400, 0.0
    %v403 = vadd.f32 %v401, %v402
    %v404 = vrot.slane %v403, 4
    %v405 = vadd.f32 %v403, %v404
    %v406 = vrot.slane %v405, 2
    %v407 = vadd.f32 %v405, %v406
    %v408 = vrot.slane %v407, 1
    %v409 = vadd.f32 %v407, %v408
    %v410 = vmul.f32 %v409, 20.0
    %v411 = vsub.f32 %v398, %v410
    %v412 = vmax.f32 %v411, 0.0
    %v413 = vrsqrt.pop %v412
    %v414 = vmul.f32 %v413, %v412
    %v415 = vmul.f32 %v414, %v413
    %v416 = vmul.f32 0.5, %v415
    %v417 = vsub.f32 1.5, %v416
    %v418 = vmul.f32 %v413, %v417
    %v419 = vmul.f32 %v412, %v418
    %vm420 = vcmp.eq.f32.partialorder %v412, inf
    %v421 = vsel %vm420, %v412, %v419
    %vm422 = vcmp.eq.f32.partialorder %v412, 0.0
    %v423 = vand.u32 %v412, 2147483648
    %v424 = vsel %vm422, %v423, %v421
    %vm425 = vcmp.lt.s32.totalorder %v20, 15
    %v426 = vsel %vm425, %v424, 0.0
    %vm427 = vcmask 516096
    %v428 = vsel %vm427, %v426, 0.0
    %429 = vadd.xlane.f32.xlu0 %v428
    %v430 = vpop.xlane.xlu0 %429
    %v431 = vrot.slane %v430, 4
    %v432 = vadd.f32 %v430, %v431
    %v433 = vrot.slane %v432, 2
    %v434 = vadd.f32 %v432, %v433
    %v435 = vrot.slane %v434, 1
    %v436 = vadd.f32 %v434, %v435
    %s437 = vtos %v436
    %v438 = vsel %vm425, 1.0, 0.0
    %v439 = vsel %vm427, %v438, 0.0
    %440 = vadd.xlane.f32.xlu0 %v439
    %v441 = vpop.xlane.xlu0 %440
    %v442 = vrot.slane %v441, 4
    %v443 = vadd.f32 %v441, %v442
    %v444 = vrot.slane %v443, 2
    %v445 = vadd.f32 %v443, %v444
    %v446 = vrot.slane %v445, 1
    %v447 = vadd.f32 %v445, %v446
    %s448 = vtos %v447
    %vm449 = vcmp.eq.s32.totalorder %v25, 0
    %v450 = vstv %s385
    %v451 = vsel %vm449, %v450, 0.0
    %vm452 = vcmp.eq.s32.totalorder %v25, 1
    %v453 = vstv %s437
    %v454 = vsel %vm452, %v453, 0.0
    %v455 = vadd.f32 %v451, %v454
    %vm456 = vcmp.eq.s32.totalorder %v25, 2
    %v457 = vstv %s448
    %v458 = vsel %vm456, %v457, 0.0
    %v459 = vadd.f32 %v455, %v458
    %460 = vst [vmem:[#allocation2] sm:$0xff] %v459
    // Predicated region
    $region10: #{tpu_custom_call.1} parent=1 // pred_check
      _
    $region11: #{tpu_custom_call.1} parent=1 // pred_check_branch
      %462 = sbr.rel (0) target = $region13
    $region12: #{tpu_custom_call.1} parent=1 // pred_region
      %464 = vsyncadd [#allocation3], 0
      %s466 = sshll.u32 [#allocation2], 4
      %s467 = int_to_ptr.vmem [resolvable:$true] %s466
      %s468 = sshll.u32 %s2, 4
      %s469 = int_to_ptr.hbm [resolvable:$true] %s468
      %471 = dma.vmem_to_hbm [thread:$0]  %s467, 128, %s469, [#allocation3]
    $region13: #{tpu_custom_call.1} parent=1 // pred_fallthru
      _
    // Predicated region
    $region14: #{tpu_custom_call.1} parent=1 // pred_check
      _
    $region15: #{tpu_custom_call.1} parent=1 // pred_check_branch
      %473 = sbr.rel (0) target = $region17
    $region16: #{tpu_custom_call.1} parent=1 // pred_region
      %475 = dma.done [#allocation3], 128
    $region17: #{tpu_custom_call.1} parent=1 // pred_fallthru
      _
    %476 = vsyncpa [#allocation3], 1

</llo_original>
